<compile_context>
chip_gen: v5e
topology: v5e:2x2
jax: 0.10.0
libtpu: 0.0.40
codegen_flags: <defaults>
</compile_context>

<pallas_src>
import functools

import numpy as np
import jax
import jax.numpy as jnp
from jax import lax
from jax.experimental import pallas as pl
from jax.experimental.pallas import tpu as pltpu

# Small, deterministic problem sizes consistent with the module's forward.
B, S, H = 2, 8, 32      # batch, seq_len, hidden_size
L = 4                   # num_labels
D = 16                  # head_size
TWO_D = 2 * D
GP_OUT = L * TWO_D      # 128 = width of the original dense projection
INV_SQRT_D = 1.0 / float(np.sqrt(D))
BIG_NEG = 1e12
PEN_C = BIG_NEG * INV_SQRT_D          # penalty constant with 1/sqrt(D) folded in
VMEM_LIMIT = 48 * 1024 * 1024          # explicit budget; fits v7x's 64 MiB physical


# ----------------------------------------------------------------------------
# Kernel 1: GlobalPointer head. grid=(B, S/TQ); projection computed once per batch
# element into a persistent VMEM scratch, span matmuls tiled over the query axis.
# ----------------------------------------------------------------------------
def _global_pointer_kernel(compute_dtype, tq,
                           x_ref, w_ref, b_ref, cos_ref, sin_ref,
                           mscale_ref, mrow_ref, mcolq_ref, trilpen_ref,
                           o_ref, krot_ref):
    qi = pl.program_id(1)

    # One fused (S,H)@(H, 2*GP_OUT) MXU matmul per batch element (qi == 0 only).
    # The RoPE pair swap is folded into the weights, 1/sqrt(D) into the q columns,
    # and the 0/1 mask into the rows, so the rotated projection in scratch already
    # yields pad * (q·k) / sqrt(D) from a plain dot.
    @pl.when(qi == 0)
    def _():
        x = x_ref[0]                                               # (S, H)
        proj = jnp.dot(x, w_ref[...], preferred_element_type=jnp.float32)
        proj = (proj + b_ref[...]).astype(compute_dtype)           # (S, 2*GP_OUT)
        rot = proj[:, :GP_OUT] * cos_ref[...] + proj[:, GP_OUT:] * sin_ref[...]
        krot_ref[...] = rot * mscale_ref[0].astype(compute_dtype)  # mask-scaled rows

    # Penalty for this query tile (shared by all labels): (1-pad)*C + tril*C,
    # with the tril part precomputed host-side and C = BIG_NEG / sqrt(D).
    pad = mcolq_ref[0] * mrow_ref[0]                               # (TQ,1)*(1,S)->(TQ,S)
    pen = (1.0 - pad) * PEN_C + trilpen_ref[...]

    row0 = pl.multiple_of(qi * tq, tq)
    for l in range(L):                                             # static unroll
        q_l = krot_ref[pl.ds(row0, tq), pl.ds(l * TWO_D, D)]       # (TQ, D)
        k_l = krot_ref[:, pl.ds(l * TWO_D + D, D)]                 # (S, D)
        logits = lax.dot_general(q_l, k_l, (((1,), (1,)), ((), ())),
                                 preferred_element_type=jnp.float32)   # (TQ, S)
        o_ref[0, l] = logits - pen


def global_pointer(seq_out, w, bias, attn_mask, *, compute_dtype=jnp.bfloat16):
    """seq_out: (B,S,H) f32; w: (H, L*2D); bias: (L*2D,); attn_mask: (B,S) 0/1 float.

    Returns logits of shape (B, L, S, S) matching torch's 'bmhd,bnhd->bhmn' with the
    attention-mask and strict-lower-triangle penalties and 1/sqrt(D) scaling applied.
    Use compute_dtype=jnp.float32 on v5e (no bf16 VALU).
    """
    tq = S if S <= 128 else 128
    assert S % tq == 0, "pad sequence length to a multiple of the query tile"
    nq = S // tq

    # RoPE tables, tiled across the 2L (q,k) heads -> lane-dense (S, GP_OUT).
    inv = 1.0 / (10000.0 ** (jnp.arange(0, D, 2, dtype=jnp.float32) / D))
    pos = jnp.arange(S, dtype=jnp.float32)[:, None] * inv[None, :]          # (S, D/2)
    cos_big = jnp.tile(jnp.repeat(jnp.cos(pos), 2, axis=-1), (1, 2 * L))    # (S, GP_OUT)
    sin_big = jnp.tile(jnp.repeat(jnp.sin(pos), 2, axis=-1), (1, 2 * L))    # (S, GP_OUT)

    # Fold 1/sqrt(D) into the q columns of the projection (exact: constant within each
    # head's q block; the RoPE pair swap only mixes columns inside the same block).
    col_scale = jnp.tile(
        jnp.concatenate([jnp.full((D,), INV_SQRT_D, jnp.float32),
                         jnp.ones((D,), jnp.float32)]), (L,))               # (GP_OUT,)
    w_s = w * col_scale[None, :]
    b_s = bias * col_scale

    # Fold the RoPE pair swap into the projection: swapped(v)[2i] = -v[2i+1],
    # swapped(v)[2i+1] = v[2i]; proj is linear, so swap(W), swap(b) give it directly.
    wr = w_s.reshape(H, GP_OUT // 2, 2)
    w_sw = jnp.stack([-wr[..., 1], wr[..., 0]], axis=-1).reshape(H, GP_OUT)
    br = b_s.reshape(GP_OUT // 2, 2)
    b_sw = jnp.stack([-br[..., 1], br[..., 0]], axis=-1).reshape(GP_OUT)
    w_fused = jnp.concatenate([w_s, w_sw], axis=-1).astype(compute_dtype)   # (H, 256)
    b_fused = jnp.concatenate([b_s, b_sw])[None, :].astype(jnp.float32)     # (1, 256)

    x = seq_out.astype(compute_dtype)
    m_col = attn_mask.reshape(B, S, 1).astype(jnp.float32)
    m_row = attn_mask.reshape(B, 1, S).astype(jnp.float32)
    tril_pen = jnp.tril(jnp.ones((S, S), jnp.float32), -1) * PEN_C          # (S, S)

    kernel = functools.partial(_global_pointer_kernel, compute_dtype, tq)
    return pl.pallas_call(
        kernel,
        out_shape=jax.ShapeDtypeStruct((B, L, S, S), jnp.float32),
        grid=(B, nq),
        in_specs=[
            pl.BlockSpec((1, S, H), lambda b, q: (b, 0, 0)),        # sequence_output (full S)
            pl.BlockSpec((H, 2 * GP_OUT), lambda b, q: (0, 0)),     # fused weight
            pl.BlockSpec((1, 2 * GP_OUT), lambda b, q: (0, 0)),     # fused bias
            pl.BlockSpec((S, GP_OUT), lambda b, q: (0, 0)),         # cos table
            pl.BlockSpec((S, GP_OUT), lambda b, q: (0, 0)),         # sin table
            pl.BlockSpec((1, S, 1), lambda b, q: (b, 0, 0)),        # mask (row-scale, full S)
            pl.BlockSpec((1, 1, S), lambda b, q: (b, 0, 0)),        # mask (key side)
            pl.BlockSpec((1, tq, 1), lambda b, q: (b, q, 0)),       # mask (query tile)
            pl.BlockSpec((tq, S), lambda b, q: (q, 0)),             # tril penalty tile
        ],
        out_specs=pl.BlockSpec((1, L, tq, S), lambda b, q: (b, 0, q, 0)),
        scratch_shapes=[pltpu.VMEM((S, GP_OUT), compute_dtype)],    # rotated projection
        compiler_params=pltpu.CompilerParams(
            dimension_semantics=("parallel", "arbitrary"),          # batch -> 2 TCs on v7x
            vmem_limit_bytes=VMEM_LIMIT),
    )(x, w_fused, b_fused,
      cos_big.astype(compute_dtype), sin_big.astype(compute_dtype),
      m_col, m_row, m_col, tril_pen)


# ----------------------------------------------------------------------------
# Kernel 2: gaiic_global_pointer_kl (rdrop KL term), tiled accumulator grid.
# ----------------------------------------------------------------------------
def _gp_kl_kernel(inv_bh, s_ref, t_ref, o_ref, acc_ref):
    @pl.when(pl.program_id(0) == 0)
    def _():
        acc_ref[0, 0] = jnp.float32(0.0)

    s = s_ref[...]
    t = t_ref[...]
    d = s - t
    d = jnp.where(jnp.isnan(d), jnp.zeros_like(d), d)
    g = jax.nn.sigmoid(s) - jax.nn.sigmoid(t)
    acc_ref[0, 0] = acc_ref[0, 0] + jnp.sum(d * g)

    @pl.when(pl.program_id(0) == pl.num_programs(0) - 1)
    def _():
        # mean over bh of row sums == total sum / bh
        o_ref[0, 0] = acc_ref[0, 0] * inv_bh


def _pick_row_tile(rows, target=512):
    if rows <= target:
        return rows
    for t in range(target, 7, -1):
        if rows % t == 0 and t % 8 == 0:
            return t
    return rows   # fallback: single block (production shapes are highly composite)


def gaiic_global_pointer_kl(s, t):
    bh = s.shape[0] * s.shape[1]
    total = int(np.prod(s.shape))
    if total % 128 == 0:                      # lane-dense slab (full 128-lane vregs)
        rows, cols = total // 128, 128
    else:
        rows, cols = bh, total // bh
    s2 = s.reshape(rows, cols)
    t2 = t.reshape(rows, cols)
    tile_r = _pick_row_tile(rows)
    grid = (rows // tile_r,)
    out = pl.pallas_call(
        functools.partial(_gp_kl_kernel, 1.0 / float(bh)),
        out_shape=jax.ShapeDtypeStruct((1, 1), jnp.float32),
        grid=grid,
        in_specs=[pl.BlockSpec((tile_r, cols), lambda i: (i, 0)),
                  pl.BlockSpec((tile_r, cols), lambda i: (i, 0))],
        out_specs=pl.BlockSpec((1, 1), lambda i: (0, 0),
                               memory_space=pltpu.MemorySpace.SMEM),
        scratch_shapes=[pltpu.SMEM((1, 1), jnp.float32)],
        compiler_params=pltpu.CompilerParams(
            dimension_semantics=("arbitrary",)),
    )(s2, t2)
    return out[0, 0]


def calc_KL(logit1, logit2):
    # (s-t)*(sigmoid(s)-sigmoid(t)) is symmetric in (s,t), so the two torch calls are
    # bitwise identical -> compute once, double it (halves launches and HBM reads).
    return 2.0 * gaiic_global_pointer_kl(logit1, logit2)


# ----------------------------------------------------------------------------
# Pure-JAX references for correctness checking
# ----------------------------------------------------------------------------
def _gp_reference(x, w, bias, mask):
    proj = jnp.einsum('bsh,hc->bsc', x, w,
                      precision=lax.Precision.HIGHEST) + bias
    proj = proj.reshape(B, S, L, 2 * D)
    q, k = proj[..., :D], proj[..., D:]
    inv = 1.0 / (10000.0 ** (jnp.arange(0, D, 2, dtype=jnp.float32) / D))
    pos = jnp.arange(S, dtype=jnp.float32)[:, None] * inv[None, :]
    cos_pos = jnp.repeat(jnp.cos(pos), 2, -1)[None, :, None, :]
    sin_pos = jnp.repeat(jnp.sin(pos), 2, -1)[None, :, None, :]

    def rot(v):
        v2 = jnp.stack([-v[..., 1::2], v[..., ::2]], -1).reshape(v.shape)
        return v * cos_pos + v2 * sin_pos

    q, k = rot(q), rot(k)
    logits = jnp.einsum('bmhd,bnhd->bhmn', q, k,
                        precision=lax.Precision.HIGHEST)
    pad = mask[:, None, None, :] * mask[:, None, :, None]
    logits = logits * pad - (1.0 - pad) * BIG_NEG
    tril = jnp.tril(jnp.ones((S, S), jnp.float32), -1)
    logits = logits - tril * BIG_NEG
    return logits / (D ** 0.5)


def _kl_reference(s, t):
    bh = s.shape[0] * s.shape[1]
    s2 = s.reshape(bh, -1)
    t2 = t.reshape(bh, -1)
    d = s2 - t2
    d = jnp.where(jnp.isnan(d), 0.0, d)
    return jnp.mean(jnp.sum(d * (jax.nn.sigmoid(s2) - jax.nn.sigmoid(t2)), axis=-1))


# ----------------------------------------------------------------------------
# GPNER forward (the pieces reproducible without the external backbone)
# ----------------------------------------------------------------------------
if __name__ == "__main__":
    key = jax.random.PRNGKey(0)
    k_x, k_w, k_noise = jax.random.split(key, 3)

    # Synthetic sequence_output (stands in for the last hidden state of NeZha).
    seq_out = jax.random.normal(k_x, (B, S, H), dtype=jnp.float32)

    # GlobalPointer.dense parameters: Linear(H -> L*2D), xavier_uniform weight.
    fan_in, fan_out = H, L * 2 * D
    limit = float(np.sqrt(6.0 / (fan_in + fan_out)))
    gp_w = jax.random.uniform(k_w, (H, L * 2 * D), jnp.float32, -limit, limit)
    gp_b = jnp.zeros((L * 2 * D,), jnp.float32)

    # attention_mask with some padding in the second example.
    attn_mask = jnp.asarray([[1.0] * S, [1.0] * (S - 2) + [0.0] * 2], jnp.float32)

    # do_gp -> gp_logit: bf16 MXU fast path (v6e/v7x), f32 accumulation.
    gp_logit = global_pointer(seq_out, gp_w, gp_b, attn_mask,
                              compute_dtype=jnp.bfloat16)
    # f32 variant (v5e path) for a tight numerical cross-check of the same kernel.
    gp_logit_f32 = global_pointer(seq_out, gp_w, gp_b, attn_mask,
                                  compute_dtype=jnp.float32)

    # rdrop second pass (no backbone dropout here; a small perturbation exercises
    # the KL kernel non-trivially).
    gp_logit2 = gp_logit + 0.01 * jax.random.normal(k_noise, gp_logit.shape, jnp.float32)

    kl_loss = calc_KL(gp_logit, gp_logit2)   # single Pallas launch (symmetry exploited)

    model_outputs = {"logits": gp_logit, "rdrop_kl": kl_loss}
    jax.block_until_ready(model_outputs["logits"])
    jax.block_until_ready(model_outputs["rdrop_kl"])

    # Correctness checks against pure-JAX references.
    ref_logits = _gp_reference(seq_out, gp_w, gp_b, attn_mask)
    np.testing.assert_allclose(np.asarray(gp_logit_f32), np.asarray(ref_logits),
                               rtol=2e-2, atol=2e-2)
    np.testing.assert_allclose(np.asarray(gp_logit), np.asarray(ref_logits),
                               rtol=1e-1, atol=1e-1)          # bf16 MXU + bf16 RoPE path
    ref_kl = _kl_reference(gp_logit, gp_logit2) + _kl_reference(gp_logit2, gp_logit)
    np.testing.assert_allclose(float(kl_loss), float(ref_kl), rtol=1e-3, atol=1e-5)

    print("KERNEL_OK")
</pallas_src>

<mosaic_0001>
module attributes {stable_mosaic.version = 11 : i64} {
  func.func @_global_pointer_kernel(%arg0: i32, %arg1: i32, %arg2: memref<1x8x32xbf16, #tpu.memory_space<vmem>>, %arg3: memref<32x256xbf16, #tpu.memory_space<vmem>>, %arg4: memref<1x256xf32, #tpu.memory_space<vmem>>, %arg5: memref<8x128xbf16, #tpu.memory_space<vmem>>, %arg6: memref<8x128xbf16, #tpu.memory_space<vmem>>, %arg7: memref<1x8x1xf32, #tpu.memory_space<vmem>>, %arg8: memref<1x1x8xf32, #tpu.memory_space<vmem>>, %arg9: memref<1x8x1xf32, #tpu.memory_space<vmem>>, %arg10: memref<8x8xf32, #tpu.memory_space<vmem>>, %arg11: memref<1x4x8x8xf32, #tpu.memory_space<vmem>>, %arg12: memref<8x128xbf16, #tpu.memory_space<vmem>>) attributes {dimension_semantics = [#tpu.dimension_semantics<parallel>, #tpu.dimension_semantics<arbitrary>], iteration_bounds = array<i64: 2, 1>, scalar_prefetch = 0 : i64, scratch_operands = 1 : i64, tpu.core_type = #tpu.core_type<tc>, window_params = [{transform_indices = @transform_0, window_bounds = array<i64: 1, 8, 32>}, {pipeline_mode = #tpu.pipeline_mode<synchronous>, transform_indices = @transform_1, window_bounds = array<i64: 32, 256>}, {pipeline_mode = #tpu.pipeline_mode<synchronous>, transform_indices = @transform_2, window_bounds = array<i64: 1, 256>}, {pipeline_mode = #tpu.pipeline_mode<synchronous>, transform_indices = @transform_3, window_bounds = array<i64: 8, 128>}, {pipeline_mode = #tpu.pipeline_mode<synchronous>, transform_indices = @transform_4, window_bounds = array<i64: 8, 128>}, {transform_indices = @transform_5, window_bounds = array<i64: 1, 8, 1>}, {transform_indices = @transform_6, window_bounds = array<i64: 1, 1, 8>}, {transform_indices = @transform_7, window_bounds = array<i64: 1, 8, 1>}, {transform_indices = @transform_8, window_bounds = array<i64: 8, 8>}, {transform_indices = @transform_9, window_bounds = array<i64: 1, 4, 8, 8>}]} {
    %c0_i32 = arith.constant 0 : i32
    %0 = arith.cmpi eq, %arg1, %c0_i32 : i32
    %1 = arith.extui %0 : i1 to i32
    %c0_i32_0 = arith.constant 0 : i32
    %2 = arith.cmpi ne, %1, %c0_i32_0 : i32
    scf.if %2 {
      %c0_31 = arith.constant 0 : index
      %c0_32 = arith.constant 0 : index
      %c0_33 = arith.constant 0 : index
      %50 = vector.load %arg2[%c0_31, %c0_32, %c0_33] : memref<1x8x32xbf16, #tpu.memory_space<vmem>>, vector<1x8x32xbf16>
      %51 = vector.shape_cast %50 : vector<1x8x32xbf16> to vector<8x32xbf16>
      %c0_34 = arith.constant 0 : index
      %c0_35 = arith.constant 0 : index
      %52 = vector.load %arg3[%c0_34, %c0_35] : memref<32x256xbf16, #tpu.memory_space<vmem>>, vector<32x256xbf16>
      %cst_36 = arith.constant dense<0.000000e+00> : vector<8x256xf32>
      %53 = tpu.matmul %51, %52, %cst_36 {dimension_numbers = #tpu.dot_dimension_numbers<[1], [0], [0], [1], [0, 0, 1, 1], [], []>} : vector<8x32xbf16>, vector<32x256xbf16>, vector<8x256xf32> -> vector<8x256xf32>
      %c0_37 = arith.constant 0 : index
      %c0_38 = arith.constant 0 : index
      %54 = vector.load %arg4[%c0_37, %c0_38] : memref<1x256xf32, #tpu.memory_space<vmem>>, vector<1x256xf32>
      %55 = vector.broadcast %54 : vector<1x256xf32> to vector<8x256xf32>
      %56 = arith.addf %53, %55 : vector<8x256xf32>
      %57 = arith.truncf %56 : vector<8x256xf32> to vector<8x256xbf16>
      %58 = vector.extract_strided_slice %57 {offsets = [0, 0], sizes = [8, 128], strides = [1, 1]} : vector<8x256xbf16> to vector<8x128xbf16>
      %c0_39 = arith.constant 0 : index
      %c0_40 = arith.constant 0 : index
      %59 = vector.load %arg5[%c0_39, %c0_40] : memref<8x128xbf16, #tpu.memory_space<vmem>>, vector<8x128xbf16>
      %60 = arith.mulf %58, %59 : vector<8x128xbf16>
      %61 = vector.extract_strided_slice %57 {offsets = [0, 128], sizes = [8, 128], strides = [1, 1]} : vector<8x256xbf16> to vector<8x128xbf16>
      %c0_41 = arith.constant 0 : index
      %c0_42 = arith.constant 0 : index
      %62 = vector.load %arg6[%c0_41, %c0_42] : memref<8x128xbf16, #tpu.memory_space<vmem>>, vector<8x128xbf16>
      %63 = arith.mulf %61, %62 : vector<8x128xbf16>
      %64 = arith.addf %60, %63 : vector<8x128xbf16>
      %c0_43 = arith.constant 0 : index
      %c0_44 = arith.constant 0 : index
      %c0_45 = arith.constant 0 : index
      %65 = vector.load %arg7[%c0_43, %c0_44, %c0_45] : memref<1x8x1xf32, #tpu.memory_space<vmem>>, vector<1x8x1xf32>
      %66 = vector.shape_cast %65 : vector<1x8x1xf32> to vector<8x1xf32>
      %67 = arith.truncf %66 : vector<8x1xf32> to vector<8x1xbf16>
      %68 = vector.broadcast %67 : vector<8x1xbf16> to vector<8x128xbf16>
      %69 = arith.mulf %64, %68 : vector<8x128xbf16>
      %c0_46 = arith.constant 0 : index
      %c0_47 = arith.constant 0 : index
      %70 = vector.load %arg12[%c0_46, %c0_47] : memref<8x128xbf16, #tpu.memory_space<vmem>>, vector<8x128xbf16>
      tpu.vector_store %arg12[%c0_46, %c0_47], %69 {strides = array<i32>} : memref<8x128xbf16, #tpu.memory_space<vmem>>, vector<8x128xbf16>,
    } else {
    }
    %c0 = arith.constant 0 : index
    %c0_1 = arith.constant 0 : index
    %c0_2 = arith.constant 0 : index
    %3 = vector.load %arg9[%c0, %c0_1, %c0_2] : memref<1x8x1xf32, #tpu.memory_space<vmem>>, vector<1x8x1xf32>
    %4 = vector.shape_cast %3 : vector<1x8x1xf32> to vector<8x1xf32>
    %c0_3 = arith.constant 0 : index
    %c0_4 = arith.constant 0 : index
    %c0_5 = arith.constant 0 : index
    %5 = vector.load %arg8[%c0_3, %c0_4, %c0_5] : memref<1x1x8xf32, #tpu.memory_space<vmem>>, vector<1x1x8xf32>
    %6 = vector.shape_cast %5 : vector<1x1x8xf32> to vector<1x8xf32>
    %7 = vector.broadcast %4 : vector<8x1xf32> to vector<8x8xf32>
    %8 = vector.broadcast %6 : vector<1x8xf32> to vector<8x8xf32>
    %9 = arith.mulf %7, %8 : vector<8x8xf32>
    %cst = arith.constant 1.000000e+00 : f32
    %10 = vector.broadcast %cst : f32 to vector<8x8xf32>
    %11 = arith.subf %10, %9 : vector<8x8xf32>
    %cst_6 = arith.constant 2.500000e+11 : f32
    %12 = vector.broadcast %cst_6 : f32 to vector<8x8xf32>
    %13 = arith.mulf %11, %12 : vector<8x8xf32>
    %c0_7 = arith.constant 0 : index
    %c0_8 = arith.constant 0 : index
    %14 = vector.load %arg10[%c0_7, %c0_8] : memref<8x8xf32, #tpu.memory_space<vmem>>, vector<8x8xf32>
    %15 = arith.addf %13, %14 : vector<8x8xf32>
    %c8_i32 = arith.constant 8 : i32
    %16 = arith.muli %arg1, %c8_i32 : i32
    %17 = tpu.assume_multiple %16, 8 : i32
    %18 = arith.index_cast %17 : i32 to index
    %c0_9 = arith.constant 0 : index
    %19 = vector.load %arg12[%18, %c0_9] : memref<8x128xbf16, #tpu.memory_space<vmem>>, vector<8x16xbf16>
    %c0_10 = arith.constant 0 : index
    %c16 = arith.constant 16 : index
    %20 = vector.load %arg12[%c0_10, %c16] : memref<8x128xbf16, #tpu.memory_space<vmem>>, vector<8x16xbf16>
    %cst_11 = arith.constant dense<0.000000e+00> : vector<8x8xf32>
    %21 = tpu.matmul %19, %20, %cst_11 {dimension_numbers = #tpu.dot_dimension_numbers<[1], [1], [0], [0], [0, 0, 1, 0], [], []>} : vector<8x16xbf16>, vector<8x16xbf16>, vector<8x8xf32> -> vector<8x8xf32>
    %22 = arith.subf %21, %15 : vector<8x8xf32>
    %c0_12 = arith.constant 0 : index
    %c0_13 = arith.constant 0 : index
    %c0_14 = arith.constant 0 : index
    %c0_15 = arith.constant 0 : index
    %23 = vector.load %arg11[%c0_12, %c0_13, %c0_14, %c0_15] : memref<1x4x8x8xf32, #tpu.memory_space<vmem>>, vector<1x1x8x8xf32>
    %24 = vector.shape_cast %23 : vector<1x1x8x8xf32> to vector<8x8xf32>
    %25 = vector.shape_cast %22 : vector<8x8xf32> to vector<1x1x8x8xf32>
    tpu.vector_store %arg11[%c0_12, %c0_13, %c0_14, %c0_15], %25 {strides = array<i32>} : memref<1x4x8x8xf32, #tpu.memory_space<vmem>>, vector<1x1x8x8xf32>,
    %26 = arith.index_cast %17 : i32 to index
    %c32 = arith.constant 32 : index
    %27 = vector.load %arg12[%26, %c32] : memref<8x128xbf16, #tpu.memory_space<vmem>>, vector<8x16xbf16>
    %c0_16 = arith.constant 0 : index
    %c48 = arith.constant 48 : index
    %28 = vector.load %arg12[%c0_16, %c48] : memref<8x128xbf16, #tpu.memory_space<vmem>>, vector<8x16xbf16>
    %cst_17 = arith.constant dense<0.000000e+00> : vector<8x8xf32>
    %29 = tpu.matmul %27, %28, %cst_17 {dimension_numbers = #tpu.dot_dimension_numbers<[1], [1], [0], [0], [0, 0, 1, 0], [], []>} : vector<8x16xbf16>, vector<8x16xbf16>, vector<8x8xf32> -> vector<8x8xf32>
    %30 = arith.subf %29, %15 : vector<8x8xf32>
    %c0_18 = arith.constant 0 : index
    %c1 = arith.constant 1 : index
    %c0_19 = arith.constant 0 : index
    %c0_20 = arith.constant 0 : index
    %31 = vector.load %arg11[%c0_18, %c1, %c0_19, %c0_20] : memref<1x4x8x8xf32, #tpu.memory_space<vmem>>, vector<1x1x8x8xf32>
    %32 = vector.shape_cast %31 : vector<1x1x8x8xf32> to vector<8x8xf32>
    %33 = vector.shape_cast %30 : vector<8x8xf32> to vector<1x1x8x8xf32>
    tpu.vector_store %arg11[%c0_18, %c1, %c0_19, %c0_20], %33 {strides = array<i32>} : memref<1x4x8x8xf32, #tpu.memory_space<vmem>>, vector<1x1x8x8xf32>,
    %34 = arith.index_cast %17 : i32 to index
    %c64 = arith.constant 64 : index
    %35 = vector.load %arg12[%34, %c64] : memref<8x128xbf16, #tpu.memory_space<vmem>>, vector<8x16xbf16>
    %c0_21 = arith.constant 0 : index
    %c80 = arith.constant 80 : index
    %36 = vector.load %arg12[%c0_21, %c80] : memref<8x128xbf16, #tpu.memory_space<vmem>>, vector<8x16xbf16>
    %cst_22 = arith.constant dense<0.000000e+00> : vector<8x8xf32>
    %37 = tpu.matmul %35, %36, %cst_22 {dimension_numbers = #tpu.dot_dimension_numbers<[1], [1], [0], [0], [0, 0, 1, 0], [], []>} : vector<8x16xbf16>, vector<8x16xbf16>, vector<8x8xf32> -> vector<8x8xf32>
    %38 = arith.subf %37, %15 : vector<8x8xf32>
    %c0_23 = arith.constant 0 : index
    %c2 = arith.constant 2 : index
    %c0_24 = arith.constant 0 : index
    %c0_25 = arith.constant 0 : index
    %39 = vector.load %arg11[%c0_23, %c2, %c0_24, %c0_25] : memref<1x4x8x8xf32, #tpu.memory_space<vmem>>, vector<1x1x8x8xf32>
    %40 = vector.shape_cast %39 : vector<1x1x8x8xf32> to vector<8x8xf32>
    %41 = vector.shape_cast %38 : vector<8x8xf32> to vector<1x1x8x8xf32>
    tpu.vector_store %arg11[%c0_23, %c2, %c0_24, %c0_25], %41 {strides = array<i32>} : memref<1x4x8x8xf32, #tpu.memory_space<vmem>>, vector<1x1x8x8xf32>,
    %42 = arith.index_cast %17 : i32 to index
    %c96 = arith.constant 96 : index
    %43 = vector.load %arg12[%42, %c96] : memref<8x128xbf16, #tpu.memory_space<vmem>>, vector<8x16xbf16>
    %c0_26 = arith.constant 0 : index
    %c112 = arith.constant 112 : index
    %44 = vector.load %arg12[%c0_26, %c112] : memref<8x128xbf16, #tpu.memory_space<vmem>>, vector<8x16xbf16>
    %cst_27 = arith.constant dense<0.000000e+00> : vector<8x8xf32>
    %45 = tpu.matmul %43, %44, %cst_27 {dimension_numbers = #tpu.dot_dimension_numbers<[1], [1], [0], [0], [0, 0, 1, 0], [], []>} : vector<8x16xbf16>, vector<8x16xbf16>, vector<8x8xf32> -> vector<8x8xf32>
    %46 = arith.subf %45, %15 : vector<8x8xf32>
    %c0_28 = arith.constant 0 : index
    %c3 = arith.constant 3 : index
    %c0_29 = arith.constant 0 : index
    %c0_30 = arith.constant 0 : index
    %47 = vector.load %arg11[%c0_28, %c3, %c0_29, %c0_30] : memref<1x4x8x8xf32, #tpu.memory_space<vmem>>, vector<1x1x8x8xf32>
    %48 = vector.shape_cast %47 : vector<1x1x8x8xf32> to vector<8x8xf32>
    %49 = vector.shape_cast %46 : vector<8x8xf32> to vector<1x1x8x8xf32>
    tpu.vector_store %arg11[%c0_28, %c3, %c0_29, %c0_30], %49 {strides = array<i32>} : memref<1x4x8x8xf32, #tpu.memory_space<vmem>>, vector<1x1x8x8xf32>,
    return
  }
  func.func @transform_0(%arg0: i32, %arg1: i32) -> (i32, i32, i32) {
    %c0_i32 = arith.constant 0 : i32
    %c0_i32_0 = arith.constant 0 : i32
    %c0_i32_1 = arith.constant 0 : i32
    return %arg0, %c0_i32, %c0_i32_0 : i32, i32, i32
  }
  func.func @transform_1(%arg0: i32, %arg1: i32) -> (i32, i32) {
    %c0_i32 = arith.constant 0 : i32
    %c0_i32_0 = arith.constant 0 : i32
    %c0_i32_1 = arith.constant 0 : i32
    return %c0_i32, %c0_i32_0 : i32, i32
  }
  func.func @transform_2(%arg0: i32, %arg1: i32) -> (i32, i32) {
    %c0_i32 = arith.constant 0 : i32
    %c0_i32_0 = arith.constant 0 : i32
    %c0_i32_1 = arith.constant 0 : i32
    return %c0_i32, %c0_i32_0 : i32, i32
  }
  func.func @transform_3(%arg0: i32, %arg1: i32) -> (i32, i32) {
    %c0_i32 = arith.constant 0 : i32
    %c0_i32_0 = arith.constant 0 : i32
    %c0_i32_1 = arith.constant 0 : i32
    return %c0_i32, %c0_i32_0 : i32, i32
  }
  func.func @transform_4(%arg0: i32, %arg1: i32) -> (i32, i32) {
    %c0_i32 = arith.constant 0 : i32
    %c0_i32_0 = arith.constant 0 : i32
    %c0_i32_1 = arith.constant 0 : i32
    return %c0_i32, %c0_i32_0 : i32, i32
  }
  func.func @transform_5(%arg0: i32, %arg1: i32) -> (i32, i32, i32) {
    %c0_i32 = arith.constant 0 : i32
    %c0_i32_0 = arith.constant 0 : i32
    %c0_i32_1 = arith.constant 0 : i32
    return %arg0, %c0_i32, %c0_i32_0 : i32, i32, i32
  }
  func.func @transform_6(%arg0: i32, %arg1: i32) -> (i32, i32, i32) {
    %c0_i32 = arith.constant 0 : i32
    %c0_i32_0 = arith.constant 0 : i32
    %c0_i32_1 = arith.constant 0 : i32
    return %arg0, %c0_i32, %c0_i32_0 : i32, i32, i32
  }
  func.func @transform_7(%arg0: i32, %arg1: i32) -> (i32, i32, i32) {
    %c0_i32 = arith.constant 0 : i32
    %c0_i32_0 = arith.constant 0 : i32
    return %arg0, %arg1, %c0_i32 : i32, i32, i32
  }
  func.func @transform_8(%arg0: i32, %arg1: i32) -> (i32, i32) {
    %c0_i32 = arith.constant 0 : i32
    %c0_i32_0 = arith.constant 0 : i32
    return %arg1, %c0_i32 : i32, i32
  }
  func.func @transform_9(%arg0: i32, %arg1: i32) -> (i32, i32, i32, i32) {
    %c0_i32 = arith.constant 0 : i32
    %c0_i32_0 = arith.constant 0 : i32
    %c0_i32_1 = arith.constant 0 : i32
    return %arg0, %c0_i32, %arg1, %c0_i32_0 : i32, i32, i32, i32
  }
}

</mosaic_0001>

<llo_original>
// kernel: tpu_custom_call.1
$region0: #{tpu_custom_call.1}
  #allocation0 [shape = 'u32[]', space=smem, size = 0x4, offset = 0x4, fixed_abs, tag = 'smem constant byte address 0x4 - core index']
  #allocation1 [shape = 'u32[72,128]{1,0:T(1,128)}', space=vmem, size = 0x9000, scoped, tag = 'internal scratch']
  #allocation2 [shape = 'bf16[8,128]{1,0:T(8,128)(2,1)}', space=vmem, size = 0x800, scoped, tag = 'scratch operand']
  %s0 = inlined_call_operand.hbm [shape: bf16[2,8,32], index: 0, kind: input, shape index: {}]
  %s1 = inlined_call_operand.vmem [shape: bf16[32,256], index: 1, kind: input, shape index: {}]
  %s2 = inlined_call_operand.vmem [shape: f32[1,256], index: 2, kind: input, shape index: {}]
  %s3 = inlined_call_operand.hbm [shape: bf16[8,128], index: 3, kind: input, shape index: {}]
  %s4 = inlined_call_operand.hbm [shape: bf16[8,128], index: 4, kind: input, shape index: {}]
  %s5 = inlined_call_operand.vmem [shape: f32[2,8,1], index: 5, kind: input, shape index: {}]
  %s6 = inlined_call_operand.vmem [shape: f32[2,1,8], index: 6, kind: input, shape index: {}]
  %s7 = inlined_call_operand.vmem [shape: f32[2,8,1], index: 7, kind: input, shape index: {}]
  %s8 = inlined_call_operand.hbm [shape: f32[8,8], index: 8, kind: input, shape index: {}]
  %s9 = inlined_call_operand.hbm [shape: f32[2,4,8,8], index: 9, kind: output, shape index: {}]
  %s10 = sld [smem:[#allocation0]]
  $region89: #{tpu_custom_call.1} parent=0
    _
  %s12 = ssub.s32 1, %s10
  %s13 = scalar_select 0, %s12, %s10
  $region1: #{tpu_custom_call.1} parent=0
    #allocation3 [shape = 'u8[4096]{0}', space=vmem, size = 0x1000, scoped, tag = 'input window, operand 0']
    #allocation4 [shape = 's32[2]{0}', space=sflag, size = 0x8, scoped, tag = 'scoped memory for tpu_custom_call.1']
    #allocation5 [shape = 's32[2]{0}', space=sflag, size = 0x8, scoped, tag = 'scoped memory for tpu_custom_call.1']
    #allocation6 [shape = 'u8[2048]{0}', space=vmem, size = 0x800, scoped, tag = 'input window, operand 3, single buffered']
    #allocation7 [shape = 's32[1]{0}', space=sflag, size = 0x4, scoped, tag = 'scoped memory for tpu_custom_call.1']
    #allocation8 [shape = 'u8[2048]{0}', space=vmem, size = 0x800, scoped, tag = 'input window, operand 4, single buffered']
    #allocation9 [shape = 'u8[4096]{0}', space=vmem, size = 0x1000, scoped, tag = 'input window, operand 8, single buffered']
    #allocation10 [shape = 's32[1]{0}', space=sflag, size = 0x4, scoped, tag = 'scoped memory for tpu_custom_call.1']
    #allocation11 [shape = 'u8[32768]{0}', space=vmem, size = 0x8000, scoped, tag = 'output window, operand 0']
    %14 = vsyncpa [#allocation4], 0
    %s15 = scalar_lea.sflag [#allocation4], 1
    %16 = vsyncpa %s15, 0
    %17 = vsyncpa [#allocation7], 0
    %18 = vsyncpa [#allocation10], 0
    %19 = vsyncpa [#allocation5], 0
    %s20 = scalar_lea.sflag [#allocation5], 1
    %21 = vsyncpa %s20, 0
    loop: start=0, step=1, limit=4
    $region2: #{tpu_custom_call.1} parent=1 // loop_pre_header
      _
    $region3: #{tpu_custom_call.1} parent=1 // loop_header
      %s23 = sphi 0, %s27
      %p24 = scmp.ge.s32.totalorder %s23, 4
      %s30 = sphi 0, %s42
      %s31 = sphi 0, %s38
      %s32 = sphi 0, %s30
      %s33 = sphi 0, %s31
      %s34 = sphi 0, %s32
      %s35 = sphi 0, %s33
      %s45 = sphi 0, %s47
      %s48 = sphi 0, %s45
      %s49 = sphi 0, %s48
      %s65 = sphi 0, %s49
      %s69 = sphi 0, %s69
      %s71 = sphi 0, %s69
      %s72 = sphi 0, %s71
      %s86 = sphi 0, %s72
      %s90 = sphi 0, %s90
      %s92 = sphi 0, %s90
      %s93 = sphi 0, %s92
      %s107 = sphi 0, %s93
      %s111 = sphi 0, %s111
      %s113 = sphi 0, %s111
      %s114 = sphi 0, %s113
      %s128 = sphi 0, %s114
      %s132 = sphi 0, %s132
      %s134 = sphi 0, %s132
      %s135 = sphi 0, %s134
      %s149 = sphi 0, %s135
      %s155 = sphi 0, %s157
      %s158 = sphi 0, %s155
      %s159 = sphi 0, %s158
      %s175 = sphi 0, %s159
      %s181 = sphi 0, %s183
      %s184 = sphi 0, %s181
      %s185 = sphi 0, %s184
      %s201 = sphi 0, %s185
      %s209 = sphi 0, %s211
      %s212 = sphi 0, %s209
      %s213 = sphi 0, %s212
      %s229 = sphi 0, %s213
      %s235 = sphi 0, %s237
      %s238 = sphi 0, %s235
      %s239 = sphi 0, %s238
      %s255 = sphi 0, %s239
      %s263 = sphi 0, %s265
      %s266 = sphi 0, %s263
      %s267 = sphi 0, %s266
      %s283 = sphi 0, %s267
    $region4: #{tpu_custom_call.1} parent=1 // loop_header_branch
      %26 = sbr.rel (%p24) target = $region8
    $region5: #{tpu_custom_call.1} parent=1 // loop_body
      %s28 = ssub.s32 %s23, 1
      %s29 = ssub.s32 %s23, 2
      %s36 = sadd.s32 1, %s31
      %p37 = scmp.ge.s32.totalorder %s36, 1
      %s38 = scalar_select %p37, 0, %s36
      %s39 = sadd.s32 1, %s30
      %s40 = scalar_select %p37, %s39, %s30
      %p41 = scmp.ge.s32.totalorder %s40, 2
      %s42 = scalar_select %p41, 0, %s40
      %s43 = ssub.s32 %s30, %s42
      %p44 = scmp.eq.s32.totalorder %s43, 0
      %s46 = sadd.s32 %s45, 1
      %s47 = scalar_select %p44, %s45, %s46
      %p50 = pneg %p44
      %p51 = scmp.eq.s32.totalorder %s23, 1
      %p52 = por %p50, %p51
      %p53 = scmp.ne.s32.totalorder %s45, %s48
      %p54 = scmp.eq.s32.totalorder %s23, 0
      %p55 = por %p53, %p54
      %p56 = scmp.ne.s32.totalorder %s45, %s48
      %p57 = scmp.eq.s32.totalorder %s28, 1
      %p58 = por %p56, %p57
      %p59 = scmp.ne.s32.totalorder %s48, %s49
      %p60 = scmp.eq.s32.totalorder %s28, 0
      %p61 = por %p59, %p60
      %p62 = scmp.ne.s32.totalorder %s48, %s49
      %p63 = scmp.eq.s32.totalorder %s29, 1
      %p64 = por %p62, %p63
      %p66 = scmp.ne.s32.totalorder %s49, %s65
      %p67 = scmp.eq.s32.totalorder %s29, 0
      %p68 = por %p66, %p67
      %s70 = sadd.s32 %s69, 1
      %p73 = scmp.eq.s32.totalorder %s23, 1
      %p74 = scmp.ne.s32.totalorder %s69, %s71
      %p75 = scmp.eq.s32.totalorder %s23, 0
      %p76 = por %p74, %p75
      %p77 = scmp.ne.s32.totalorder %s69, %s71
      %p78 = scmp.eq.s32.totalorder %s28, 1
      %p79 = por %p77, %p78
      %p80 = scmp.ne.s32.totalorder %s71, %s72
      %p81 = scmp.eq.s32.totalorder %s28, 0
      %p82 = por %p80, %p81
      %p83 = scmp.ne.s32.totalorder %s71, %s72
      %p84 = scmp.eq.s32.totalorder %s29, 1
      %p85 = por %p83, %p84
      %p87 = scmp.ne.s32.totalorder %s72, %s86
      %p88 = scmp.eq.s32.totalorder %s29, 0
      %p89 = por %p87, %p88
      %s91 = sadd.s32 %s90, 1
      %p94 = scmp.eq.s32.totalorder %s23, 1
      %p95 = scmp.ne.s32.totalorder %s90, %s92
      %p96 = scmp.eq.s32.totalorder %s23, 0
      %p97 = por %p95, %p96
      %p98 = scmp.ne.s32.totalorder %s90, %s92
      %p99 = scmp.eq.s32.totalorder %s28, 1
      %p100 = por %p98, %p99
      %p101 = scmp.ne.s32.totalorder %s92, %s93
      %p102 = scmp.eq.s32.totalorder %s28, 0
      %p103 = por %p101, %p102
      %p104 = scmp.ne.s32.totalorder %s92, %s93
      %p105 = scmp.eq.s32.totalorder %s29, 1
      %p106 = por %p104, %p105
      %p108 = scmp.ne.s32.totalorder %s93, %s107
      %p109 = scmp.eq.s32.totalorder %s29, 0
      %p110 = por %p108, %p109
      %s112 = sadd.s32 %s111, 1
      %p115 = scmp.eq.s32.totalorder %s23, 1
      %p116 = scmp.ne.s32.totalorder %s111, %s113
      %p117 = scmp.eq.s32.totalorder %s23, 0
      %p118 = por %p116, %p117
      %p119 = scmp.ne.s32.totalorder %s111, %s113
      %p120 = scmp.eq.s32.totalorder %s28, 1
      %p121 = por %p119, %p120
      %p122 = scmp.ne.s32.totalorder %s113, %s114
      %p123 = scmp.eq.s32.totalorder %s28, 0
      %p124 = por %p122, %p123
      %p125 = scmp.ne.s32.totalorder %s113, %s114
      %p126 = scmp.eq.s32.totalorder %s29, 1
      %p127 = por %p125, %p126
      %p129 = scmp.ne.s32.totalorder %s114, %s128
      %p130 = scmp.eq.s32.totalorder %s29, 0
      %p131 = por %p129, %p130
      %s133 = sadd.s32 %s132, 1
      %p136 = scmp.eq.s32.totalorder %s23, 1
      %p137 = scmp.ne.s32.totalorder %s132, %s134
      %p138 = scmp.eq.s32.totalorder %s23, 0
      %p139 = por %p137, %p138
      %p140 = scmp.ne.s32.totalorder %s132, %s134
      %p141 = scmp.eq.s32.totalorder %s28, 1
      %p142 = por %p140, %p141
      %p143 = scmp.ne.s32.totalorder %s134, %s135
      %p144 = scmp.eq.s32.totalorder %s28, 0
      %p145 = por %p143, %p144
      %p146 = scmp.ne.s32.totalorder %s134, %s135
      %p147 = scmp.eq.s32.totalorder %s29, 1
      %p148 = por %p146, %p147
      %p150 = scmp.ne.s32.totalorder %s135, %s149
      %p151 = scmp.eq.s32.totalorder %s29, 0
      %p152 = por %p150, %p151
      %s153 = ssub.s32 %s30, %s42
      %p154 = scmp.eq.s32.totalorder %s153, 0
      %s156 = sadd.s32 %s155, 1
      %s157 = scalar_select %p154, %s155, %s156
      %p160 = pneg %p154
      %p161 = scmp.eq.s32.totalorder %s23, 1
      %p162 = por %p160, %p161
      %p163 = scmp.ne.s32.totalorder %s155, %s158
      %p164 = scmp.eq.s32.totalorder %s23, 0
      %p165 = por %p163, %p164
      %p166 = scmp.ne.s32.totalorder %s155, %s158
      %p167 = scmp.eq.s32.totalorder %s28, 1
      %p168 = por %p166, %p167
      %p169 = scmp.ne.s32.totalorder %s158, %s159
      %p170 = scmp.eq.s32.totalorder %s28, 0
      %p171 = por %p169, %p170
      %p172 = scmp.ne.s32.totalorder %s158, %s159
      %p173 = scmp.eq.s32.totalorder %s29, 1
      %p174 = por %p172, %p173
      %p176 = scmp.ne.s32.totalorder %s159, %s175
      %p177 = scmp.eq.s32.totalorder %s29, 0
      %p178 = por %p176, %p177
      %s179 = ssub.s32 %s30, %s42
      %p180 = scmp.eq.s32.totalorder %s179, 0
      %s182 = sadd.s32 %s181, 1
      %s183 = scalar_select %p180, %s181, %s182
      %p186 = pneg %p180
      %p187 = scmp.eq.s32.totalorder %s23, 1
      %p188 = por %p186, %p187
      %p189 = scmp.ne.s32.totalorder %s181, %s184
      %p190 = scmp.eq.s32.totalorder %s23, 0
      %p191 = por %p189, %p190
      %p192 = scmp.ne.s32.totalorder %s181, %s184
      %p193 = scmp.eq.s32.totalorder %s28, 1
      %p194 = por %p192, %p193
      %p195 = scmp.ne.s32.totalorder %s184, %s185
      %p196 = scmp.eq.s32.totalorder %s28, 0
      %p197 = por %p195, %p196
      %p198 = scmp.ne.s32.totalorder %s184, %s185
      %p199 = scmp.eq.s32.totalorder %s29, 1
      %p200 = por %p198, %p199
      %p202 = scmp.ne.s32.totalorder %s185, %s201
      %p203 = scmp.eq.s32.totalorder %s29, 0
      %p204 = por %p202, %p203
      %s205 = ssub.s32 %s30, %s42
      %s206 = ssub.s32 %s31, %s38
      %s207 = sor.u32 %s205, %s206
      %p208 = scmp.eq.s32.totalorder %s207, 0
      %s210 = sadd.s32 %s209, 1
      %s211 = scalar_select %p208, %s209, %s210
      %p214 = pneg %p208
      %p215 = scmp.eq.s32.totalorder %s23, 1
      %p216 = por %p214, %p215
      %p217 = scmp.ne.s32.totalorder %s209, %s212
      %p218 = scmp.eq.s32.totalorder %s23, 0
      %p219 = por %p217, %p218
      %p220 = scmp.ne.s32.totalorder %s209, %s212
      %p221 = scmp.eq.s32.totalorder %s28, 1
      %p222 = por %p220, %p221
      %p223 = scmp.ne.s32.totalorder %s212, %s213
      %p224 = scmp.eq.s32.totalorder %s28, 0
      %p225 = por %p223, %p224
      %p226 = scmp.ne.s32.totalorder %s212, %s213
      %p227 = scmp.eq.s32.totalorder %s29, 1
      %p228 = por %p226, %p227
      %p230 = scmp.ne.s32.totalorder %s213, %s229
      %p231 = scmp.eq.s32.totalorder %s29, 0
      %p232 = por %p230, %p231
      %s233 = ssub.s32 %s31, %s38
      %p234 = scmp.eq.s32.totalorder %s233, 0
      %s236 = sadd.s32 %s235, 1
      %s237 = scalar_select %p234, %s235, %s236
      %p240 = pneg %p234
      %p241 = scmp.eq.s32.totalorder %s23, 1
      %p242 = por %p240, %p241
      %p243 = scmp.ne.s32.totalorder %s235, %s238
      %p244 = scmp.eq.s32.totalorder %s23, 0
      %p245 = por %p243, %p244
      %p246 = scmp.ne.s32.totalorder %s235, %s238
      %p247 = scmp.eq.s32.totalorder %s28, 1
      %p248 = por %p246, %p247
      %p249 = scmp.ne.s32.totalorder %s238, %s239
      %p250 = scmp.eq.s32.totalorder %s28, 0
      %p251 = por %p249, %p250
      %p252 = scmp.ne.s32.totalorder %s238, %s239
      %p253 = scmp.eq.s32.totalorder %s29, 1
      %p254 = por %p252, %p253
      %p256 = scmp.ne.s32.totalorder %s239, %s255
      %p257 = scmp.eq.s32.totalorder %s29, 0
      %p258 = por %p256, %p257
      %s259 = ssub.s32 %s30, %s42
      %s260 = ssub.s32 %s31, %s38
      %s261 = sor.u32 %s259, %s260
      %p262 = scmp.eq.s32.totalorder %s261, 0
      %s264 = sadd.s32 %s263, 1
      %s265 = scalar_select %p262, %s263, %s264
      %p268 = pneg %p262
      %p269 = scmp.eq.s32.totalorder %s23, 1
      %p270 = por %p268, %p269
      %p271 = scmp.ne.s32.totalorder %s263, %s266
      %p272 = scmp.eq.s32.totalorder %s23, 0
      %p273 = por %p271, %p272
      %p274 = scmp.ne.s32.totalorder %s263, %s266
      %p275 = scmp.eq.s32.totalorder %s28, 1
      %p276 = por %p274, %p275
      %p277 = scmp.ne.s32.totalorder %s266, %s267
      %p278 = scmp.eq.s32.totalorder %s28, 0
      %p279 = por %p277, %p278
      %p280 = scmp.ne.s32.totalorder %s266, %s267
      %p281 = scmp.eq.s32.totalorder %s29, 1
      %p282 = por %p280, %p281
      %p284 = scmp.ne.s32.totalorder %s267, %s283
      %p285 = scmp.eq.s32.totalorder %s29, 0
      %p286 = por %p284, %p285
      %p287 = scmp.le.s32.totalorder 1, %s23
      %p288 = scmp.lt.s32.totalorder %s23, 3
      %p289 = pnand %p287, %p288
      %p290 = pneg %p289
      // Predicated region
      $region9: #{tpu_custom_call.1} parent=5 // pred_check
        _
      $region10: #{tpu_custom_call.1} parent=5 // pred_check_branch
        %292 = sbr.rel (%p289) target = $region12
      $region11: #{tpu_custom_call.1} parent=5 // pred_region
        %s293 = ssub.s32 %s23, 1
        // Predicated region
        $region13: #{tpu_custom_call.1} parent=11 // pred_check
          %p294 = pneg %p82
        $region14: #{tpu_custom_call.1} parent=11 // pred_check_branch
          %296 = sbr.rel (%p294) target = $region16
        $region15: #{tpu_custom_call.1} parent=11 // pred_region
          _
        $region16: #{tpu_custom_call.1} parent=11 // pred_fallthru
          _
        // Predicated region
        $region17: #{tpu_custom_call.1} parent=11 // pred_check
          %p297 = pneg %p103
        $region18: #{tpu_custom_call.1} parent=11 // pred_check_branch
          %299 = sbr.rel (%p297) target = $region20
        $region19: #{tpu_custom_call.1} parent=11 // pred_region
          _
        $region20: #{tpu_custom_call.1} parent=11 // pred_fallthru
          _
        // Predicated region
        $region21: #{tpu_custom_call.1} parent=11 // pred_check
          %p300 = pneg %p124
        $region22: #{tpu_custom_call.1} parent=11 // pred_check_branch
          %302 = sbr.rel (%p300) target = $region24
        $region23: #{tpu_custom_call.1} parent=11 // pred_region
          %304 = vsyncadd [#allocation7], 0
          %s306 = sshll.u32 %s3, 4
          %s307 = int_to_ptr.hbm [resolvable:$true] %s306
          %s308 = sshll.u32 [#allocation6], 4
          %s309 = int_to_ptr.vmem [resolvable:$true] %s308
          %311 = dma.hbm_to_vmem [thread:$0]  %s307, 64, %s309, [#allocation7]
        $region24: #{tpu_custom_call.1} parent=11 // pred_fallthru
          _
        // Predicated region
        $region25: #{tpu_custom_call.1} parent=11 // pred_check
          %p312 = pneg %p145
        $region26: #{tpu_custom_call.1} parent=11 // pred_check_branch
          %314 = sbr.rel (%p312) target = $region28
        $region27: #{tpu_custom_call.1} parent=11 // pred_region
          %316 = vsyncadd [#allocation7], 0
          %s318 = sshll.u32 %s4, 4
          %s319 = int_to_ptr.hbm [resolvable:$true] %s318
          %s320 = sshll.u32 [#allocation8], 4
          %s321 = int_to_ptr.vmem [resolvable:$true] %s320
          %323 = dma.hbm_to_vmem [thread:$0]  %s319, 64, %s321, [#allocation7]
        $region28: #{tpu_custom_call.1} parent=11 // pred_fallthru
          _
        // Predicated region
        $region29: #{tpu_custom_call.1} parent=11 // pred_check
          %p324 = pneg %p251
        $region30: #{tpu_custom_call.1} parent=11 // pred_check_branch
          %326 = sbr.rel (%p324) target = $region32
        $region31: #{tpu_custom_call.1} parent=11 // pred_region
          %328 = vsyncadd [#allocation10], 0
          %s329 = smul.addr %s33, 8
          %s330 = scalar_lea.hbm %s8, %s329
          %s332 = sshll.u32 %s330, 4
          %s333 = int_to_ptr.hbm [resolvable:$true] %s332
          %s334 = sshll.u32 [#allocation9], 4
          %s335 = int_to_ptr.vmem [resolvable:$true] %s334
          %337 = dma.hbm_to_vmem [thread:$0]  %s333, 128, %s335, [#allocation10]
        $region32: #{tpu_custom_call.1} parent=11 // pred_fallthru
          _
      $region12: #{tpu_custom_call.1} parent=5 // pred_fallthru
        _
      %p338 = scmp.lt.s32.totalorder %s23, 2
      // Predicated region
      $region33: #{tpu_custom_call.1} parent=5 // pred_check
        %p339 = pneg %p338
      $region34: #{tpu_custom_call.1} parent=5 // pred_check_branch
        %341 = sbr.rel (%p339) target = $region36
      $region35: #{tpu_custom_call.1} parent=5 // pred_region
        // Predicated region
        $region37: #{tpu_custom_call.1} parent=35 // pred_check
          %p342 = pneg %p55
        $region38: #{tpu_custom_call.1} parent=35 // pred_check_branch
          %344 = sbr.rel (%p342) target = $region40
        $region39: #{tpu_custom_call.1} parent=35 // pred_region
          %s345 = sand.u32 %s45, 1
          %s346 = scalar_lea.sflag [#allocation4], %s345
          %s347 = sand.u32 %s45, 1
          %s348 = smul.addr %s347, 4
          %s349 = scalar_lea.vmem [#allocation3], %s348
          %351 = vsyncadd %s346, 0
          %s352 = smul.addr %s30, 4
          %s353 = scalar_lea.hbm %s0, %s352
          %s355 = sshll.u32 %s353, 4
          %s356 = int_to_ptr.hbm [resolvable:$true] %s355
          %s357 = sshll.u32 %s349, 4
          %s358 = int_to_ptr.vmem [resolvable:$true] %s357
          %360 = dma.hbm_to_vmem [thread:$0]  %s356, 64, %s358, %s346
        $region40: #{tpu_custom_call.1} parent=35 // pred_fallthru
          _
        // Predicated region
        $region41: #{tpu_custom_call.1} parent=35 // pred_check
          %p361 = pneg %p165
        $region42: #{tpu_custom_call.1} parent=35 // pred_check_branch
          %363 = sbr.rel (%p361) target = $region44
        $region43: #{tpu_custom_call.1} parent=35 // pred_region
          %p364 = scmp.lt.s32.totalorder %s30, 1
          %s365 = scalar_select %p364, %s30, 1
          %s366 = smul.addr %s365, 8
          %s367 = scalar_lea.vmem %s5, %s366
        $region44: #{tpu_custom_call.1} parent=35 // pred_fallthru
          _
        // Predicated region
        $region45: #{tpu_custom_call.1} parent=35 // pred_check
          %p368 = pneg %p191
        $region46: #{tpu_custom_call.1} parent=35 // pred_check_branch
          %370 = sbr.rel (%p368) target = $region48
        $region47: #{tpu_custom_call.1} parent=35 // pred_region
          %p371 = scmp.lt.s32.totalorder %s30, 1
          %s372 = scalar_select %p371, %s30, 1
          %s373 = scalar_lea.vmem %s6, %s372
        $region48: #{tpu_custom_call.1} parent=35 // pred_fallthru
          _
        // Predicated region
        $region49: #{tpu_custom_call.1} parent=35 // pred_check
          %p374 = pneg %p219
        $region50: #{tpu_custom_call.1} parent=35 // pred_check_branch
          %376 = sbr.rel (%p374) target = $region52
        $region51: #{tpu_custom_call.1} parent=35 // pred_region
          %p377 = scmp.lt.s32.totalorder %s30, 1
          %s378 = scalar_select %p377, %s30, 1
          %p379 = scmp.lt.s32.totalorder %s31, 0
          %s380 = scalar_select %p379, %s31, 0
          %s381 = sadd.s32 %s380, %s378
          %s382 = smul.addr %s381, 8
          %s383 = scalar_lea.vmem %s7, %s382
        $region52: #{tpu_custom_call.1} parent=35 // pred_fallthru
          _
      $region36: #{tpu_custom_call.1} parent=5 // pred_fallthru
        _
      %p384 = scmp.le.s32.totalorder 1, %s23
      %p385 = scmp.lt.s32.totalorder %s23, 3
      %p386 = pnand %p384, %p385
      %p387 = pneg %p386
      // Predicated region
      $region53: #{tpu_custom_call.1} parent=5 // pred_check
        _
      $region54: #{tpu_custom_call.1} parent=5 // pred_check_branch
        %389 = sbr.rel (%p386) target = $region56
      $region55: #{tpu_custom_call.1} parent=5 // pred_region
        %s390 = ssub.s32 %s23, 1
        %s391 = sand.u32 %s48, 1
        %s392 = scalar_lea.sflag [#allocation4], %s391
        %s393 = sand.u32 %s48, 1
        %s394 = smul.addr %s393, 4
        %s395 = scalar_lea.vmem [#allocation3], %s394
        // Predicated region
        $region57: #{tpu_custom_call.1} parent=55 // pred_check
          %p396 = pneg %p61
        $region58: #{tpu_custom_call.1} parent=55 // pred_check_branch
          %398 = sbr.rel (%p396) target = $region60
        $region59: #{tpu_custom_call.1} parent=55 // pred_region
          %400 = dma.done %s392, 64
        $region60: #{tpu_custom_call.1} parent=55 // pred_fallthru
          _
        // Predicated region
        $region61: #{tpu_custom_call.1} parent=55 // pred_check
          %p401 = pneg %p124
        $region62: #{tpu_custom_call.1} parent=55 // pred_check_branch
          %403 = sbr.rel (%p401) target = $region64
        $region63: #{tpu_custom_call.1} parent=55 // pred_region
          %405 = dma.done [#allocation7], 64
        $region64: #{tpu_custom_call.1} parent=55 // pred_fallthru
          _
        // Predicated region
        $region65: #{tpu_custom_call.1} parent=55 // pred_check
          %p406 = pneg %p145
        $region66: #{tpu_custom_call.1} parent=55 // pred_check_branch
          %408 = sbr.rel (%p406) target = $region68
        $region67: #{tpu_custom_call.1} parent=55 // pred_region
          %410 = dma.done [#allocation7], 64
        $region68: #{tpu_custom_call.1} parent=55 // pred_fallthru
          _
        // Predicated region
        $region69: #{tpu_custom_call.1} parent=55 // pred_check
          %p411 = pneg %p251
        $region70: #{tpu_custom_call.1} parent=55 // pred_check_branch
          %413 = sbr.rel (%p411) target = $region72
        $region71: #{tpu_custom_call.1} parent=55 // pred_region
          %415 = dma.done [#allocation10], 128
        $region72: #{tpu_custom_call.1} parent=55 // pred_fallthru
          _
        %s416 = sand.u32 %s48, 1
        %s417 = scalar_lea.sflag [#allocation4], %s416
        %s418 = sand.u32 %s48, 1
        %s419 = smul.addr %s418, 4
        %s420 = scalar_lea.vmem [#allocation3], %s419
        %p421 = pneg %p61
        %p422 = pneg %p58
        %p423 = pneg %p82
        %p424 = pneg %p79
        %p425 = pneg %p103
        %p426 = pneg %p100
        %p427 = pneg %p124
        %p428 = pneg %p121
        %p429 = pneg %p145
        %p430 = pneg %p142
        %p431 = scmp.lt.s32.totalorder %s32, 1
        %s432 = scalar_select %p431, %s32, 1
        %s433 = smul.addr %s432, 8
        %s434 = scalar_lea.vmem %s5, %s433
        %p435 = pneg %p171
        %p436 = pneg %p168
        %p437 = scmp.lt.s32.totalorder %s32, 1
        %s438 = scalar_select %p437, %s32, 1
        %s439 = scalar_lea.vmem %s6, %s438
        %p440 = pneg %p197
        %p441 = pneg %p194
        %p442 = scmp.lt.s32.totalorder %s32, 1
        %s443 = scalar_select %p442, %s32, 1
        %p444 = scmp.lt.s32.totalorder %s33, 0
        %s445 = scalar_select %p444, %s33, 0
        %s446 = sadd.s32 %s445, %s443
        %s447 = smul.addr %s446, 8
        %s448 = scalar_lea.vmem %s7, %s447
        %p449 = pneg %p225
        %p450 = pneg %p222
        %p451 = pneg %p251
        %p452 = pneg %p248
        %p453 = pneg %p279
        %p454 = pneg %p276
        %s455 = sand.u32 %s266, 1
        %s456 = scalar_lea.sflag [#allocation5], %s455
        %s457 = sand.u32 %s266, 1
        %s458 = smul.addr %s457, 32
        %s459 = scalar_lea.vmem [#allocation11], %s458
        %p460 = scmp.lt.s32.totalorder %s32, 1
        %s461 = scalar_select %p460, %s32, 1
        %s462 = smul.addr %s461, 8
        %s463 = scalar_lea.vmem %s5, %s462
        %p464 = scmp.lt.s32.totalorder %s32, 1
        %s465 = scalar_select %p464, %s32, 1
        %s466 = scalar_lea.vmem %s6, %s465
        %p467 = scmp.lt.s32.totalorder %s32, 1
        %s468 = scalar_select %p467, %s32, 1
        %p469 = scmp.lt.s32.totalorder %s33, 0
        %s470 = scalar_select %p469, %s33, 0
        %s471 = sadd.s32 %s470, %s468
        %s472 = smul.addr %s471, 8
        %s473 = scalar_lea.vmem %s7, %s472
        %p475 = scmp.eq.s32.totalorder %s33, 0
        // Predicated region
        $region73: #{tpu_custom_call.1} parent=55 // pred_check
          %p476 = pneg %p475
        $region74: #{tpu_custom_call.1} parent=55 // pred_check_branch
          %478 = sbr.rel (%p476) target = $region76
        $region75: #{tpu_custom_call.1} parent=55 // pred_region
          %v479 = vld [vmem:[%s395] sm:$0xf]
          %v480 = vld [vmem:[%s1] sm:$0xff]
          %v481 = vld [vmem:[%s1 + $0x8] sm:$0xff]
          %v482 = vld [vmem:[%s1 + $0x10] sm:$0xff]
          %v483 = vld [vmem:[%s1 + $0x18] sm:$0xff]
          %v484 = vld [vmem:[%s2] sm:$0x3]
          %v486 = vperm.slane %v484, 0
          %v487 = vperm.slane %v484, 1
          %v494 = vunpack.c.l.b16 %v480
          %v495 = vunpack.c.h.b16 %v480
          %v496 = vunpack.c.l.b16 %v481
          %v497 = vunpack.c.h.b16 %v481
          %v498 = vunpack.c.l.b16 %v482
          %v499 = vunpack.c.h.b16 %v482
          %v500 = vunpack.c.l.b16 %v483
          %v501 = vunpack.c.h.b16 %v483
          %v502 = vpack.c.b16 %v496, %v494
          %v503 = vpack.c.b16 %v497, %v495
          %v504 = vpack.c.b16 %v500, %v498
          %v505 = vpack.c.b16 %v501, %v499
          %vm510 = vcmask 261120
          %v512 = vsel %vm510, %v479, 0
          %514 = vmatpush.bf16.msra.mxu0 0
          %515 = vmatpush.bf16.msra.mxu0 0
          %516 = vmatpush.bf16.msra.mxu0 0
          %517 = vmatpush.bf16.msra.mxu0 0
          %518 = vmatpush.bf16.msra.mxu0 0
          %519 = vmatpush.bf16.msra.mxu0 0
          %520 = vmatpush.bf16.msra.mxu0 %v504
          %521 = vmatpush.bf16.msra.mxu0 %v502
          %522 = vmatmul.bf16.gmra.mxu0 %v512
          %v523 = vpop.f32.mrf.mxu0
          %v524 = vadd.f32 %v486, %v523
          %v525 = vpop.f32.mrf.mxu0
          %526 = vdwg.mxu0
          %527 = vmatpush.bf16.msra.mxu0 0
          %528 = vmatpush.bf16.msra.mxu0 0
          %529 = vmatpush.bf16.msra.mxu0 0
          %530 = vmatpush.bf16.msra.mxu0 0
          %531 = vmatpush.bf16.msra.mxu0 0
          %532 = vmatpush.bf16.msra.mxu0 0
          %533 = vmatpush.bf16.msra.mxu0 %v505
          %534 = vmatpush.bf16.msra.mxu0 %v503
          %535 = vmatmul.bf16.gmra.mxu0 %v512
          %v536 = vpop.f32.mrf.mxu0
          %v537 = vadd.f32 %v487, %v536
          %v538 = vpop.f32.mrf.mxu0
          %539 = vdwg.mxu0
          %v540 = vpack.c.bf16 %v537, %v524
          %v541 = vld [vmem:[#allocation6] sm:$0xf]
          %v542 = vunpack.c.l.bf16 %v540
          %v543 = vunpack.c.l.bf16 %v541
          %v544 = vmul.f32 %v542, %v543
          %v545 = vpack.c.bf16 %v544, %v544
          %v546 = vld [vmem:[#allocation8] sm:$0xf]
          %v548 = vrot.slane %v540, 4
          %v550 = vunpack.c.l.bf16 %v548
          %v551 = vunpack.c.l.bf16 %v546
          %v552 = vmul.f32 %v550, %v551
          %v553 = vpack.c.bf16 %v552, %v552
          %v554 = vunpack.c.l.bf16 %v545
          %v555 = vunpack.c.l.bf16 %v553
          %v556 = vadd.f32 %v554, %v555
          %v557 = vpack.c.bf16 %v556, %v556
          %v558 = vld [vmem:[%s463] sm:$0xff]
          %v559 = vpack.c.bf16 %v558, %v558
          %561 = vset.pattern.permute.xlu0 0
          %562 = vperm.xlu0 %561, %v559
          %v563 = vpop.permute.xlu0 %562
          %v566 = vunpack.c.l.s4 839922192
          %v567 = vunpack.c.0.s8 %v566
          %v568 = vperm.slane %v563, %v567
          %v569 = vunpack.c.l.bf16 %v557
          %v570 = vunpack.c.l.bf16 %v568
          %v571 = vmul.f32 %v569, %v570
          %v572 = vpack.c.bf16 %v571, %v571
          %573 = vst [vmem:[#allocation2] sm:$0xf] %v572
        $region76: #{tpu_custom_call.1} parent=55 // pred_fallthru
          _
        %v574 = vld [vmem:[%s473] sm:$0xff]
        %v575 = vld [vmem:[%s466] sm:$0x1]
        %577 = vset.pattern.permute.xlu0 0
        %578 = vperm.xlu0 %577, %v574
        %v579 = vpop.permute.xlu0 %578
        %v582 = vperm.slane %v575, 0
        %v584 = vmul.f32 %v579, %v582
        %v585 = vsub.f32 1.0, %v584
        %v586 = vmul.f32 %v585, 2.5e+11
        %v587 = vld [vmem:[#allocation9] sm:$0xff]
        %v588 = vadd.f32 %v586, %v587
        %s589 = smul.u32 %s33, 8
        %s590 = sshra.s32 %s589, 3
        %s591 = sand.u32 %s589, 7
        %s592 = smul.addr %s590, 4
        %s593 = scalar_lea.vmem [#allocation2], %s592
        %v594 = vld [vmem:[%s593] sm:$0xf]
        %v595 = vld [vmem:[#allocation2] sm:$0xf]
        %v597 = vunpack.c.l.b16 %v595
        %v598 = vpack.c.b16 %v597, %v597
        %599 = vrot.lane.b32.xlu0 %v598, 112
        %v600 = vpop.permute.xlu0 %599
        %vm601 = vcmask 130048
        %v603 = vsel %vm601, %v594, 0
        %v606 = vsel %vm601, %v600, 0
        %608 = vmatpush.bf16.xpose.msra.mxu0 0
        %609 = vmatpush.bf16.xpose.msra.mxu0 0
        %610 = vmatpush.bf16.xpose.msra.mxu0 0
        %611 = vmatpush.bf16.xpose.msra.mxu0 0
        %612 = vmatpush.bf16.xpose.msra.mxu0 0
        %613 = vmatpush.bf16.xpose.msra.mxu0 0
        %614 = vmatpush.bf16.xpose.msra.mxu0 0
        %615 = vmatpush.bf16.xpose.msra.mxu0 %v606
        %616 = vmatmul.bf16.gmra.mxu0 %v603
        %v617 = vpop.f32.mrf.mxu0
        %v618 = vadd.f32 0.0, %v617
        %v619 = vpop.f32.mrf.mxu0
        %620 = vdwg.mxu0
        %v621 = vsub.f32 %v618, %v588
        %vm622 = vcmask 64512
        %623 = vst.msk [vmem:[%s459] sm:$0xff] %vm622, %v621
        %v624 = vld [vmem:[%s593] sm:$0xf]
        %v625 = vld [vmem:[#allocation2] sm:$0xf]
        %v627 = vunpack.c.l.b16 %v624
        %v628 = vpack.c.b16 %v627, %v627
        %629 = vrot.lane.b32.xlu0 %v628, 96
        %v630 = vpop.permute.xlu0 %629
        %v632 = vunpack.c.l.b16 %v625
        %v633 = vpack.c.b16 %v632, %v632
        %634 = vrot.lane.b32.xlu0 %v633, 80
        %v635 = vpop.permute.xlu0 %634
        %v637 = vsel %vm601, %v630, 0
        %v640 = vsel %vm601, %v635, 0
        %642 = vmatpush.bf16.xpose.msra.mxu0 0
        %643 = vmatpush.bf16.xpose.msra.mxu0 0
        %644 = vmatpush.bf16.xpose.msra.mxu0 0
        %645 = vmatpush.bf16.xpose.msra.mxu0 0
        %646 = vmatpush.bf16.xpose.msra.mxu0 0
        %647 = vmatpush.bf16.xpose.msra.mxu0 0
        %648 = vmatpush.bf16.xpose.msra.mxu0 0
        %649 = vmatpush.bf16.xpose.msra.mxu0 %v640
        %650 = vmatmul.bf16.gmra.mxu0 %v637
        %v651 = vpop.f32.mrf.mxu0
        %v652 = vadd.f32 0.0, %v651
        %v653 = vpop.f32.mrf.mxu0
        %654 = vdwg.mxu0
        %v655 = vsub.f32 %v652, %v588
        %s656 = scalar_lea.vmem %s459, 8 [#allocation11]
        %657 = vst.msk [vmem:[%s656] sm:$0xff] %vm622, %v655
        %v658 = vld [vmem:[%s593] sm:$0xf]
        %v659 = vld [vmem:[#allocation2] sm:$0xf]
        %v661 = vunpack.c.l.b16 %v658
        %v662 = vpack.c.b16 %v661, %v661
        %663 = vrot.lane.b32.xlu0 %v662, 64
        %v664 = vpop.permute.xlu0 %663
        %v666 = vunpack.c.l.b16 %v659
        %v667 = vpack.c.b16 %v666, %v666
        %668 = vrot.lane.b32.xlu0 %v667, 48
        %v669 = vpop.permute.xlu0 %668
        %v671 = vsel %vm601, %v664, 0
        %v674 = vsel %vm601, %v669, 0
        %676 = vmatpush.bf16.xpose.msra.mxu0 0
        %677 = vmatpush.bf16.xpose.msra.mxu0 0
        %678 = vmatpush.bf16.xpose.msra.mxu0 0
        %679 = vmatpush.bf16.xpose.msra.mxu0 0
        %680 = vmatpush.bf16.xpose.msra.mxu0 0
        %681 = vmatpush.bf16.xpose.msra.mxu0 0
        %682 = vmatpush.bf16.xpose.msra.mxu0 0
        %683 = vmatpush.bf16.xpose.msra.mxu0 %v674
        %684 = vmatmul.bf16.gmra.mxu0 %v671
        %v685 = vpop.f32.mrf.mxu0
        %v686 = vadd.f32 0.0, %v685
        %v687 = vpop.f32.mrf.mxu0
        %688 = vdwg.mxu0
        %v689 = vsub.f32 %v686, %v588
        %s690 = scalar_lea.vmem %s459, 16 [#allocation11]
        %691 = vst.msk [vmem:[%s690] sm:$0xff] %vm622, %v689
        %v692 = vld [vmem:[%s593] sm:$0xf]
        %v693 = vld [vmem:[#allocation2] sm:$0xf]
        %v695 = vunpack.c.l.b16 %v692
        %v696 = vpack.c.b16 %v695, %v695
        %697 = vrot.lane.b32.xlu0 %v696, 32
        %v698 = vpop.permute.xlu0 %697
        %v700 = vunpack.c.l.b16 %v693
        %v701 = vpack.c.b16 %v700, %v700
        %702 = vrot.lane.b32.xlu0 %v701, 16
        %v703 = vpop.permute.xlu0 %702
        %v705 = vsel %vm601, %v698, 0
        %v708 = vsel %vm601, %v703, 0
        %710 = vmatpush.bf16.xpose.msra.mxu0 0
        %711 = vmatpush.bf16.xpose.msra.mxu0 0
        %712 = vmatpush.bf16.xpose.msra.mxu0 0
        %713 = vmatpush.bf16.xpose.msra.mxu0 0
        %714 = vmatpush.bf16.xpose.msra.mxu0 0
        %715 = vmatpush.bf16.xpose.msra.mxu0 0
        %716 = vmatpush.bf16.xpose.msra.mxu0 0
        %717 = vmatpush.bf16.xpose.msra.mxu0 %v708
        %718 = vmatmul.bf16.gmra.mxu0 %v705
        %v719 = vpop.f32.mrf.mxu0
        %v720 = vadd.f32 0.0, %v719
        %v721 = vpop.f32.mrf.mxu0
        %722 = vdwg.mxu0
        %v723 = vsub.f32 %v720, %v588
        %s724 = scalar_lea.vmem %s459, 24 [#allocation11]
        %725 = vst.msk [vmem:[%s724] sm:$0xff] %vm622, %v723
        %s726 = sand.u32 %s266, 1
        %s727 = scalar_lea.sflag [#allocation5], %s726
        %s728 = sand.u32 %s266, 1
        %s729 = smul.addr %s728, 32
        %s730 = scalar_lea.vmem [#allocation11], %s729
        // Predicated region
        $region77: #{tpu_custom_call.1} parent=55 // pred_check
          %p731 = pneg %p276
        $region78: #{tpu_custom_call.1} parent=55 // pred_check_branch
          %733 = sbr.rel (%p731) target = $region80
        $region79: #{tpu_custom_call.1} parent=55 // pred_region
          %735 = vsyncadd %s727, 0
          %s736 = smul.addr %s32, 4
          %s737 = sadd.s32 %s33, %s736
          %s738 = smul.addr %s737, 8
          %s739 = scalar_lea.hbm %s9, %s738
          %s740 = sshll.u32 %s730, 4
          %s741 = int_to_ptr.vmem [resolvable:$true] %s740
          %s742 = sshll.u32 %s739, 4
          %s743 = int_to_ptr.hbm [resolvable:$true] %s742
          %748 = dma.vmem_to_hbm [thread:$0]  %s741, 512, %s743, %s727, 128, 128, 8
        $region80: #{tpu_custom_call.1} parent=55 // pred_fallthru
          _
      $region56: #{tpu_custom_call.1} parent=5 // pred_fallthru
        _
      %p749 = scmp.le.s32.totalorder 2, %s23
      // Predicated region
      $region81: #{tpu_custom_call.1} parent=5 // pred_check
        %p750 = pneg %p749
      $region82: #{tpu_custom_call.1} parent=5 // pred_check_branch
        %752 = sbr.rel (%p750) target = $region84
      $region83: #{tpu_custom_call.1} parent=5 // pred_region
        %s753 = ssub.s32 %s23, 2
        // Predicated region
        $region85: #{tpu_custom_call.1} parent=83 // pred_check
          %p754 = pneg %p282
        $region86: #{tpu_custom_call.1} parent=83 // pred_check_branch
          %756 = sbr.rel (%p754) target = $region88
        $region87: #{tpu_custom_call.1} parent=83 // pred_region
          %s757 = sand.u32 %s267, 1
          %s758 = scalar_lea.sflag [#allocation5], %s757
          %s759 = sand.u32 %s267, 1
          %s760 = smul.addr %s759, 32
          %s761 = scalar_lea.vmem [#allocation11], %s760
          %763 = dma.done %s758, 512
        $region88: #{tpu_custom_call.1} parent=83 // pred_fallthru
          _
      $region84: #{tpu_custom_call.1} parent=5 // pred_fallthru
        _
    $region6: #{tpu_custom_call.1} parent=1 // loop_footer
      %s27 = sadd.s32 1, %s23
    $region7: #{tpu_custom_call.1} parent=1 // loop_footer_branch
      %22 = sbr.rel target = $region3
    $region8: #{tpu_custom_call.1} parent=1 // loop_exit
      _
    %764 = vsyncpa [#allocation4], 1
    %s765 = scalar_lea.sflag [#allocation4], 1
    %766 = vsyncpa %s765, 1
    %767 = vsyncpa [#allocation7], 1
    %768 = vsyncpa [#allocation10], 1
    %769 = vsyncpa [#allocation5], 1
    %s770 = scalar_lea.sflag [#allocation5], 1
    %771 = vsyncpa %s770, 1

</llo_original>
